<compile_context>
chip_gen: v5e
topology: v5e:2x2
jax: 0.10.0
libtpu: 0.0.40
codegen_flags: <defaults>
</compile_context>

<pallas_src>
import functools

import jax
import jax.numpy as jnp
from jax.experimental import pallas as pl
from jax.experimental.pallas import tpu as pltpu

_MIB = 1024 * 1024
_FUSED_VMEM_BUDGET = 40 * _MIB   # keep fused-path (double-buffered) blocks well under v7x 64 MiB
_SPLIT_TILE_BUDGET = 8 * _MIB    # per-step x/out buffer budget for the split path


# ---------------------------------------------------------------------------
# Kernels
# ---------------------------------------------------------------------------

def _fused_kernel(x_ref, wfc_ref, bfc_ref, wconv_ref, bconv_ref, o_ref, *,
                  hw_true, matmul_dtype):
    """One batch per grid step: pool -> fused fc -> sigmoid -> scale-folded 1x1 conv."""
    x = x_ref[0]                                    # (C, HW_pad), caller dtype
    xf = x.astype(jnp.float32)

    hw_pad = x.shape[1]
    if hw_pad != hw_true:                           # static: only traced when padded
        pos = jax.lax.broadcasted_iota(jnp.int32, xf.shape, 1)
        x_for_max = jnp.where(pos < hw_true, xf, -jnp.inf)
    else:
        x_for_max = xf

    # avg + max pooling over the spatial (lane) axis. Zero padding does not affect the
    # sum; the mean divides by the true HW.
    pooled = (jnp.sum(xf, axis=1, keepdims=True) * (1.0 / hw_true)
              + jnp.max(x_for_max, axis=1, keepdims=True))               # (C, 1)

    # Fused fc: fc(avg) + fc(max) == W_fc @ (avg + max) + 2*b_fc (single GEMV).
    att = jnp.dot(wfc_ref[...], pooled,
                  preferred_element_type=jnp.float32) + 2.0 * bfc_ref[...]  # (C, 1)
    scale = jax.nn.sigmoid(att)                                          # (C, 1)

    # Fold per-channel scale into the conv weight columns:
    #   W_conv @ (x * scale) == (W_conv * scale^T) @ x
    w_scaled = wconv_ref[...] * jnp.transpose(scale)                     # (C, C)

    out = jnp.dot(w_scaled.astype(matmul_dtype), x.astype(matmul_dtype),
                  preferred_element_type=jnp.float32) + bconv_ref[...]   # (C, HW_pad)
    o_ref[0] = out.astype(o_ref.dtype)


def _scale_kernel(x_ref, wfc_t_ref, bfc_ref, scale_ref, sum_scr, max_scr, *,
                  hw_true, hw_tile, padded):
    """Accumulate avg/max pools over HW tiles; batched fc + sigmoid at the last step."""
    h = pl.program_id(0)
    x = x_ref[...].astype(jnp.float32)              # (B, C, T)

    @pl.when(h == 0)
    def _init():
        sum_scr[...] = jnp.zeros_like(sum_scr)
        max_scr[...] = jnp.full_like(max_scr, -jnp.inf)

    if padded:                                      # static: only traced when padded
        pos = h * hw_tile + jax.lax.broadcasted_iota(jnp.int32, x.shape, 2)
        x_for_max = jnp.where(pos < hw_true, x, -jnp.inf)
    else:
        x_for_max = x

    sum_scr[...] += jnp.sum(x, axis=2)
    max_scr[...] = jnp.maximum(max_scr[...], jnp.max(x_for_max, axis=2))

    @pl.when(h == pl.num_programs(0) - 1)
    def _finalize():
        pooled = sum_scr[...] * (1.0 / hw_true) + max_scr[...]           # (B, C)
        # Batched fc for all batches: one (B,C)@(C,C) matmul instead of B GEMVs.
        att = jnp.dot(pooled, wfc_t_ref[...],
                      preferred_element_type=jnp.float32) + 2.0 * bfc_ref[...]
        scale_ref[...] = jax.nn.sigmoid(att)                             # (B, C)


def _conv_kernel(scale_ref, x_ref, wconv_ref, bconv_ref, o_ref, *, matmul_dtype):
    """Scale-folded 1x1 conv on one lane-dense (C, T) tile of one batch."""
    s = scale_ref[0]                                # (1, C)
    w_scaled = wconv_ref[...] * s                   # (C, C) — scale the columns
    x = x_ref[0]                                    # (C, T)
    out = jnp.dot(w_scaled.astype(matmul_dtype), x.astype(matmul_dtype),
                  preferred_element_type=jnp.float32) + bconv_ref[...]
    o_ref[0] = out.astype(o_ref.dtype)


# ---------------------------------------------------------------------------
# Wrapper
# ---------------------------------------------------------------------------

def _round_up(n, m):
    return ((n + m - 1) // m) * m


def _compiler_params(dim_sems, need_bytes):
    # Raise the scoped-VMEM limit with headroom when the double-buffered blocks need it,
    # but never above v7x's 64 MiB physical VMEM.
    limit = int(min(max(need_bytes + 8 * _MIB, 32 * _MIB), 64 * _MIB))
    return pltpu.CompilerParams(dimension_semantics=dim_sems, vmem_limit_bytes=limit)


def channel_gate(x_nchw, w_fc, b_fc, w_conv, b_conv, *,
                 hw_tile=None, force_split=False, matmul_dtype=jnp.bfloat16):
    """ChannelGate forward. x_nchw: (B, C, H, W); weights: (C, C); biases: (C,)."""
    B, C, H, W = x_nchw.shape
    HW = H * W
    xbytes = jnp.dtype(x_nchw.dtype).itemsize

    # Keep x in the caller's dtype end-to-end (no extra HBM pass for a wrapper cast).
    x2 = x_nchw.reshape(B, C, HW)
    w_fc = w_fc.astype(jnp.float32)
    w_conv = w_conv.astype(jnp.float32)
    bfc_col = b_fc.reshape(C, 1).astype(jnp.float32)
    bconv_col = b_conv.reshape(C, 1).astype(jnp.float32)

    # NOTE: weights keep default double-buffering (constant index_map => single DMA anyway);
    # pl.Buffered(1) would reclaim the duplicate (C,C) copies for very large C.
    weight_bytes = 2 * (2 * C * C * 4 + 2 * C * 4)

    hw_pad128 = _round_up(HW, 128)                             # lane-dense last dim
    fused_need = 4 * C * hw_pad128 * xbytes + weight_bytes     # x + out, double-buffered
    use_fused = (not force_split) and fused_need <= _FUSED_VMEM_BUDGET

    if use_fused:
        hw_pad = hw_pad128
        if hw_pad != HW:
            x2 = jnp.pad(x2, ((0, 0), (0, 0), (0, hw_pad - HW)))
        kernel = functools.partial(_fused_kernel, hw_true=HW, matmul_dtype=matmul_dtype)
        out2 = pl.pallas_call(
            kernel,
            out_shape=jax.ShapeDtypeStruct((B, C, hw_pad), x_nchw.dtype),
            grid=(B,),
            in_specs=[
                pl.BlockSpec((1, C, hw_pad), lambda b: (b, 0, 0)),
                pl.BlockSpec((C, C), lambda b: (0, 0)),
                pl.BlockSpec((C, 1), lambda b: (0, 0)),
                pl.BlockSpec((C, C), lambda b: (0, 0)),
                pl.BlockSpec((C, 1), lambda b: (0, 0)),
            ],
            out_specs=pl.BlockSpec((1, C, hw_pad), lambda b: (b, 0, 0)),
            compiler_params=_compiler_params(("parallel",), fused_need),
        )(x2, w_fc, bfc_col, w_conv, bconv_col)
    else:
        # -------- split path: (1) pooled sigmoid scales, (2) tiled scale-folded conv --------
        if hw_tile is None:
            per_lane = max(2 * B * C * xbytes, 4 * C * xbytes)
            hw_tile = (_SPLIT_TILE_BUDGET // per_lane) // 128 * 128
        hw_tile = max(128, int(hw_tile) // 128 * 128)
        hw_tile = int(min(hw_tile, _round_up(HW, 128)))
        hw_pad = _round_up(HW, hw_tile)
        n_tiles = hw_pad // hw_tile
        padded = hw_pad != HW
        if padded:
            x2 = jnp.pad(x2, ((0, 0), (0, 0), (0, hw_pad - HW)))

        # (1) per-(B, C) sigmoid scales (HW reduction axis, batched fc at the end).
        s1_need = 2 * B * C * hw_tile * xbytes + weight_bytes + 2 * B * C * 4
        scale_kernel = functools.partial(
            _scale_kernel, hw_true=HW, hw_tile=hw_tile, padded=padded)
        scales = pl.pallas_call(
            scale_kernel,
            out_shape=jax.ShapeDtypeStruct((B, C), jnp.float32),
            grid=(n_tiles,),
            in_specs=[
                pl.BlockSpec((B, C, hw_tile), lambda h: (0, 0, h)),
                pl.BlockSpec((C, C), lambda h: (0, 0)),
                pl.BlockSpec((1, C), lambda h: (0, 0)),
            ],
            out_specs=pl.BlockSpec((B, C), lambda h: (0, 0)),
            scratch_shapes=[pltpu.VMEM((B, C), jnp.float32),
                            pltpu.VMEM((B, C), jnp.float32)],
            compiler_params=_compiler_params(("arbitrary",), s1_need),
        )(x2, w_fc.T, b_fc.reshape(1, C).astype(jnp.float32))
        scales = scales.reshape(B, 1, C)            # tiny XLA reshape between the two calls

        # (2) scale-folded 1x1 conv over lane-dense tiles; both grid axes parallel.
        s2_need = 4 * C * hw_tile * xbytes + weight_bytes
        conv_kernel = functools.partial(_conv_kernel, matmul_dtype=matmul_dtype)
        out2 = pl.pallas_call(
            conv_kernel,
            out_shape=jax.ShapeDtypeStruct((B, C, hw_pad), x_nchw.dtype),
            grid=(B, n_tiles),
            in_specs=[
                pl.BlockSpec((1, 1, C), lambda b, h: (b, 0, 0)),
                pl.BlockSpec((1, C, hw_tile), lambda b, h: (b, 0, h)),
                pl.BlockSpec((C, C), lambda b, h: (0, 0)),
                pl.BlockSpec((C, 1), lambda b, h: (0, 0)),
            ],
            out_specs=pl.BlockSpec((1, C, hw_tile), lambda b, h: (b, 0, h)),
            compiler_params=_compiler_params(("parallel", "parallel"), s2_need),
        )(scales, x2, w_conv, bconv_col)

    if hw_pad != HW:
        out2 = out2[:, :, :HW]
    return out2.reshape(B, C, H, W)


def channel_gate_ref(x, w_fc, b_fc, w_conv, b_conv):
    """Pure-JAX reference mirroring the PyTorch forward (NCHW, pool_types=['avg','max'])."""
    avg = jnp.mean(x, axis=(2, 3))                                   # (B, C)
    mx = jnp.max(x, axis=(2, 3))                                     # (B, C)
    att = (avg @ w_fc.T + b_fc) + (mx @ w_fc.T + b_fc)               # (B, C)
    scale = jax.nn.sigmoid(att)[:, :, None, None]
    y = x * scale
    return jnp.einsum('oc,bchw->bohw', w_conv, y) + b_conv[None, :, None, None]


# TODO(synk): 'lp' and 'lse' pool types from the PyTorch module are not implemented
# (the module's default pool_types=['avg','max'] is what this kernel covers).

if __name__ == "__main__":
    key = jax.random.PRNGKey(0)
    B, C, H, W = 2, 4, 16, 16

    k_x, k_wfc, k_bfc, k_wc, k_bc = jax.random.split(key, 5)
    x = jax.random.normal(k_x, (B, C, H, W), dtype=jnp.float32)

    # nn.Conv2d(C, C, 1)-style init: uniform in +/- 1/sqrt(fan_in).
    bound = 1.0 / jnp.sqrt(jnp.float32(C))
    w_fc = jax.random.uniform(k_wfc, (C, C), jnp.float32, -bound, bound)
    b_fc = jax.random.uniform(k_bfc, (C,), jnp.float32, -bound, bound)
    w_conv = jax.random.uniform(k_wc, (C, C), jnp.float32, -bound, bound)
    b_conv = jax.random.uniform(k_bc, (C,), jnp.float32, -bound, bound)

    ref = channel_gate_ref(x, w_fc, b_fc, w_conv, b_conv)

    # Fused single-pass kernel, f32 matmul (exactness check).
    out_f32 = channel_gate(x, w_fc, b_fc, w_conv, b_conv, matmul_dtype=jnp.float32)
    out_f32 = jax.block_until_ready(out_f32)
    assert out_f32.shape == (B, C, H, W)
    assert jnp.allclose(out_f32, ref, atol=1e-4, rtol=1e-4), "fused f32 mismatch vs reference"

    # Fused single-pass kernel, bf16 MXU matmul (default fast path).
    out_bf16 = channel_gate(x, w_fc, b_fc, w_conv, b_conv)
    out_bf16 = jax.block_until_ready(out_bf16)
    assert jnp.allclose(out_bf16, ref, atol=5e-2, rtol=5e-2), "fused bf16 mismatch vs reference"

    # Split (scale kernel + tiled conv kernel) path, forced at a small HW tile.
    out_split = channel_gate(x, w_fc, b_fc, w_conv, b_conv, force_split=True, hw_tile=128)
    out_split = jax.block_until_ready(out_split)
    assert out_split.shape == (B, C, H, W)
    assert jnp.allclose(out_split, ref, atol=5e-2, rtol=5e-2), "split path mismatch vs reference"

    print("KERNEL_OK")
</pallas_src>

<mosaic_0001>
module attributes {stable_mosaic.version = 11 : i64} {
  func.func @_fused_kernel(%arg0: i32, %arg1: memref<1x4x256xf32, #tpu.memory_space<vmem>>, %arg2: memref<4x4xf32, #tpu.memory_space<vmem>>, %arg3: memref<4x1xf32, #tpu.memory_space<vmem>>, %arg4: memref<4x4xf32, #tpu.memory_space<vmem>>, %arg5: memref<4x1xf32, #tpu.memory_space<vmem>>, %arg6: memref<1x4x256xf32, #tpu.memory_space<vmem>>) attributes {dimension_semantics = [#tpu.dimension_semantics<parallel>], iteration_bounds = array<i64: 2>, scalar_prefetch = 0 : i64, scratch_operands = 0 : i64, tpu.core_type = #tpu.core_type<tc>, window_params = [{transform_indices = @transform_0, window_bounds = array<i64: 1, 4, 256>}, {pipeline_mode = #tpu.pipeline_mode<synchronous>, transform_indices = @transform_1, window_bounds = array<i64: 4, 4>}, {pipeline_mode = #tpu.pipeline_mode<synchronous>, transform_indices = @transform_2, window_bounds = array<i64: 4, 1>}, {pipeline_mode = #tpu.pipeline_mode<synchronous>, transform_indices = @transform_3, window_bounds = array<i64: 4, 4>}, {pipeline_mode = #tpu.pipeline_mode<synchronous>, transform_indices = @transform_4, window_bounds = array<i64: 4, 1>}, {transform_indices = @transform_5, window_bounds = array<i64: 1, 4, 256>}]} {
    %c0 = arith.constant 0 : index
    %c0_0 = arith.constant 0 : index
    %c0_1 = arith.constant 0 : index
    %0 = vector.load %arg1[%c0, %c0_0, %c0_1] : memref<1x4x256xf32, #tpu.memory_space<vmem>>, vector<1x4x256xf32>
    %1 = vector.shape_cast %0 : vector<1x4x256xf32> to vector<4x256xf32>
    %cst = arith.constant dense<0.000000e+00> : vector<4xf32>
    %2 = vector.multi_reduction <add>, %1, %cst [1] : vector<4x256xf32> to vector<4xf32>
    %3 = vector.shape_cast %2 : vector<4xf32> to vector<4x1xf32>
    %cst_2 = arith.constant 3.906250e-03 : f32
    %4 = vector.broadcast %cst_2 : f32 to vector<4x1xf32>
    %5 = arith.mulf %3, %4 : vector<4x1xf32>
    %cst_3 = arith.constant dense<0xFF800000> : vector<4xf32>
    %6 = vector.multi_reduction <maximumf>, %1, %cst_3 [1] : vector<4x256xf32> to vector<4xf32>
    %7 = vector.shape_cast %6 : vector<4xf32> to vector<4x1xf32>
    %8 = arith.addf %5, %7 : vector<4x1xf32>
    %c0_4 = arith.constant 0 : index
    %c0_5 = arith.constant 0 : index
    %9 = vector.load %arg2[%c0_4, %c0_5] : memref<4x4xf32, #tpu.memory_space<vmem>>, vector<4x4xf32>
    %cst_6 = arith.constant dense<0.000000e+00> : vector<4x1xf32>
    %10 = tpu.matmul %9, %8, %cst_6 {dimension_numbers = #tpu.dot_dimension_numbers<[1], [0], [0], [1], [0, 0, 1, 1], [], []>} : vector<4x4xf32>, vector<4x1xf32>, vector<4x1xf32> -> vector<4x1xf32>
    %c0_7 = arith.constant 0 : index
    %c0_8 = arith.constant 0 : index
    %11 = vector.load %arg3[%c0_7, %c0_8] : memref<4x1xf32, #tpu.memory_space<vmem>>, vector<4x1xf32>
    %cst_9 = arith.constant 2.000000e+00 : f32
    %12 = vector.broadcast %cst_9 : f32 to vector<4x1xf32>
    %13 = arith.mulf %12, %11 : vector<4x1xf32>
    %14 = arith.addf %10, %13 : vector<4x1xf32>
    %15 = arith.negf %14 : vector<4x1xf32>
    %16 = math.exp %15 : vector<4x1xf32>
    %cst_10 = arith.constant 1.000000e+00 : f32
    %17 = vector.broadcast %cst_10 : f32 to vector<4x1xf32>
    %18 = arith.addf %17, %16 : vector<4x1xf32>
    %19 = arith.divf %17, %18 : vector<4x1xf32>
    %c0_11 = arith.constant 0 : index
    %c0_12 = arith.constant 0 : index
    %20 = vector.load %arg4[%c0_11, %c0_12] : memref<4x4xf32, #tpu.memory_space<vmem>>, vector<4x4xf32>
    %21 = tpu.transpose %19, [1, 0] : vector<4x1xf32> -> vector<1x4xf32>
    %22 = vector.broadcast %21 : vector<1x4xf32> to vector<4x4xf32>
    %23 = arith.mulf %20, %22 : vector<4x4xf32>
    %cst_13 = arith.constant dense<0.000000e+00> : vector<4x256xf32>
    %24 = tpu.matmul %23, %1, %cst_13 {dimension_numbers = #tpu.dot_dimension_numbers<[1], [0], [0], [1], [0, 0, 1, 1], [], []>} : vector<4x4xf32>, vector<4x256xf32>, vector<4x256xf32> -> vector<4x256xf32>
    %c0_14 = arith.constant 0 : index
    %c0_15 = arith.constant 0 : index
    %25 = vector.load %arg5[%c0_14, %c0_15] : memref<4x1xf32, #tpu.memory_space<vmem>>, vector<4x1xf32>
    %26 = vector.broadcast %25 : vector<4x1xf32> to vector<4x256xf32>
    %27 = arith.addf %24, %26 : vector<4x256xf32>
    %c0_16 = arith.constant 0 : index
    %c0_17 = arith.constant 0 : index
    %c0_18 = arith.constant 0 : index
    %28 = vector.load %arg6[%c0_16, %c0_17, %c0_18] : memref<1x4x256xf32, #tpu.memory_space<vmem>>, vector<1x4x256xf32>
    %29 = vector.shape_cast %28 : vector<1x4x256xf32> to vector<4x256xf32>
    %30 = vector.shape_cast %27 : vector<4x256xf32> to vector<1x4x256xf32>
    tpu.vector_store %arg6[%c0_16, %c0_17, %c0_18], %30 {strides = array<i32>} : memref<1x4x256xf32, #tpu.memory_space<vmem>>, vector<1x4x256xf32>,
    return
  }
  func.func @transform_0(%arg0: i32) -> (i32, i32, i32) {
    %c0_i32 = arith.constant 0 : i32
    %c0_i32_0 = arith.constant 0 : i32
    %c0_i32_1 = arith.constant 0 : i32
    return %arg0, %c0_i32, %c0_i32_0 : i32, i32, i32
  }
  func.func @transform_1(%arg0: i32) -> (i32, i32) {
    %c0_i32 = arith.constant 0 : i32
    %c0_i32_0 = arith.constant 0 : i32
    %c0_i32_1 = arith.constant 0 : i32
    return %c0_i32, %c0_i32_0 : i32, i32
  }
  func.func @transform_2(%arg0: i32) -> (i32, i32) {
    %c0_i32 = arith.constant 0 : i32
    %c0_i32_0 = arith.constant 0 : i32
    %c0_i32_1 = arith.constant 0 : i32
    return %c0_i32, %c0_i32_0 : i32, i32
  }
  func.func @transform_3(%arg0: i32) -> (i32, i32) {
    %c0_i32 = arith.constant 0 : i32
    %c0_i32_0 = arith.constant 0 : i32
    %c0_i32_1 = arith.constant 0 : i32
    return %c0_i32, %c0_i32_0 : i32, i32
  }
  func.func @transform_4(%arg0: i32) -> (i32, i32) {
    %c0_i32 = arith.constant 0 : i32
    %c0_i32_0 = arith.constant 0 : i32
    %c0_i32_1 = arith.constant 0 : i32
    return %c0_i32, %c0_i32_0 : i32, i32
  }
  func.func @transform_5(%arg0: i32) -> (i32, i32, i32) {
    %c0_i32 = arith.constant 0 : i32
    %c0_i32_0 = arith.constant 0 : i32
    %c0_i32_1 = arith.constant 0 : i32
    return %arg0, %c0_i32, %c0_i32_0 : i32, i32, i32
  }
}

</mosaic_0001>

<llo_original>
// kernel: tpu_custom_call.1
$region0: #{tpu_custom_call.1}
  #allocation0 [shape = 'u32[]', space=smem, size = 0x4, offset = 0x4, fixed_abs, tag = 'smem constant byte address 0x4 - core index']
  #allocation1 [shape = 'u32[72,128]{1,0:T(1,128)}', space=vmem, size = 0x9000, scoped, tag = 'internal scratch']
  %s0 = inlined_call_operand.hbm [shape: f32[2,4,256], index: 0, kind: input, shape index: {}]
  %s1 = inlined_call_operand.vmem [shape: f32[4,4], index: 1, kind: input, shape index: {}]
  %s2 = inlined_call_operand.vmem [shape: f32[4,1], index: 2, kind: input, shape index: {}]
  %s3 = inlined_call_operand.vmem [shape: f32[4,4], index: 3, kind: input, shape index: {}]
  %s4 = inlined_call_operand.vmem [shape: f32[4,1], index: 4, kind: input, shape index: {}]
  %s5 = inlined_call_operand.hbm [shape: f32[2,4,256], index: 5, kind: output, shape index: {}]
  %s6 = sld [smem:[#allocation0]]
  $region57: #{tpu_custom_call.1} parent=0
    _
  %s8 = ssub.s32 1, %s6
  %s9 = scalar_select 0, %s8, %s6
  $region1: #{tpu_custom_call.1} parent=0
    #allocation2 [shape = 'u8[8192]{0}', space=vmem, size = 0x2000, scoped, tag = 'input window, operand 0']
    #allocation3 [shape = 's32[2]{0}', space=sflag, size = 0x8, scoped, tag = 'scoped memory for tpu_custom_call.1']
    #allocation4 [shape = 's32[2]{0}', space=sflag, size = 0x8, scoped, tag = 'scoped memory for tpu_custom_call.1']
    #allocation5 [shape = 'u8[8192]{0}', space=vmem, size = 0x2000, scoped, tag = 'output window, operand 0']
    %10 = vsyncpa [#allocation3], 0
    %s11 = scalar_lea.sflag [#allocation3], 1
    %12 = vsyncpa %s11, 0
    %13 = vsyncpa [#allocation4], 0
    %s14 = scalar_lea.sflag [#allocation4], 1
    %15 = vsyncpa %s14, 0
    loop: start=0, step=1, limit=4
    $region2: #{tpu_custom_call.1} parent=1 // loop_pre_header
      _
    $region3: #{tpu_custom_call.1} parent=1 // loop_header
      %s17 = sphi 0, %s21
      %p18 = scmp.ge.s32.totalorder %s17, 4
      %s27 = sphi 0, %s29
      %s30 = sphi 0, %s27
      %s31 = sphi 0, %s30
      %s47 = sphi 0, %s31
      %s51 = sphi 0, %s51
      %s53 = sphi 0, %s51
      %s54 = sphi 0, %s53
      %s68 = sphi 0, %s54
      %s72 = sphi 0, %s72
      %s74 = sphi 0, %s72
      %s75 = sphi 0, %s74
      %s89 = sphi 0, %s75
      %s93 = sphi 0, %s93
      %s95 = sphi 0, %s93
      %s96 = sphi 0, %s95
      %s110 = sphi 0, %s96
      %s114 = sphi 0, %s114
      %s116 = sphi 0, %s114
      %s117 = sphi 0, %s116
      %s131 = sphi 0, %s117
      %s137 = sphi 0, %s139
      %s140 = sphi 0, %s137
      %s141 = sphi 0, %s140
      %s157 = sphi 0, %s141
    $region4: #{tpu_custom_call.1} parent=1 // loop_header_branch
      %20 = sbr.rel (%p18) target = $region8
    $region5: #{tpu_custom_call.1} parent=1 // loop_body
      %s22 = ssub.s32 %s17, 1
      %s23 = ssub.s32 %s17, 2
      %s24 = sadd.s32 %s17, 1
      %s25 = ssub.s32 %s17, %s24
      %p26 = scmp.eq.s32.totalorder %s25, 0
      %s28 = sadd.s32 %s27, 1
      %s29 = scalar_select %p26, %s27, %s28
      %p32 = pneg %p26
      %p33 = scmp.eq.s32.totalorder %s17, 1
      %p34 = por %p32, %p33
      %p35 = scmp.ne.s32.totalorder %s27, %s30
      %p36 = scmp.eq.s32.totalorder %s17, 0
      %p37 = por %p35, %p36
      %p38 = scmp.ne.s32.totalorder %s27, %s30
      %p39 = scmp.eq.s32.totalorder %s22, 1
      %p40 = por %p38, %p39
      %p41 = scmp.ne.s32.totalorder %s30, %s31
      %p42 = scmp.eq.s32.totalorder %s22, 0
      %p43 = por %p41, %p42
      %p44 = scmp.ne.s32.totalorder %s30, %s31
      %p45 = scmp.eq.s32.totalorder %s23, 1
      %p46 = por %p44, %p45
      %p48 = scmp.ne.s32.totalorder %s31, %s47
      %p49 = scmp.eq.s32.totalorder %s23, 0
      %p50 = por %p48, %p49
      %s52 = sadd.s32 %s51, 1
      %p55 = scmp.eq.s32.totalorder %s17, 1
      %p56 = scmp.ne.s32.totalorder %s51, %s53
      %p57 = scmp.eq.s32.totalorder %s17, 0
      %p58 = por %p56, %p57
      %p59 = scmp.ne.s32.totalorder %s51, %s53
      %p60 = scmp.eq.s32.totalorder %s22, 1
      %p61 = por %p59, %p60
      %p62 = scmp.ne.s32.totalorder %s53, %s54
      %p63 = scmp.eq.s32.totalorder %s22, 0
      %p64 = por %p62, %p63
      %p65 = scmp.ne.s32.totalorder %s53, %s54
      %p66 = scmp.eq.s32.totalorder %s23, 1
      %p67 = por %p65, %p66
      %p69 = scmp.ne.s32.totalorder %s54, %s68
      %p70 = scmp.eq.s32.totalorder %s23, 0
      %p71 = por %p69, %p70
      %s73 = sadd.s32 %s72, 1
      %p76 = scmp.eq.s32.totalorder %s17, 1
      %p77 = scmp.ne.s32.totalorder %s72, %s74
      %p78 = scmp.eq.s32.totalorder %s17, 0
      %p79 = por %p77, %p78
      %p80 = scmp.ne.s32.totalorder %s72, %s74
      %p81 = scmp.eq.s32.totalorder %s22, 1
      %p82 = por %p80, %p81
      %p83 = scmp.ne.s32.totalorder %s74, %s75
      %p84 = scmp.eq.s32.totalorder %s22, 0
      %p85 = por %p83, %p84
      %p86 = scmp.ne.s32.totalorder %s74, %s75
      %p87 = scmp.eq.s32.totalorder %s23, 1
      %p88 = por %p86, %p87
      %p90 = scmp.ne.s32.totalorder %s75, %s89
      %p91 = scmp.eq.s32.totalorder %s23, 0
      %p92 = por %p90, %p91
      %s94 = sadd.s32 %s93, 1
      %p97 = scmp.eq.s32.totalorder %s17, 1
      %p98 = scmp.ne.s32.totalorder %s93, %s95
      %p99 = scmp.eq.s32.totalorder %s17, 0
      %p100 = por %p98, %p99
      %p101 = scmp.ne.s32.totalorder %s93, %s95
      %p102 = scmp.eq.s32.totalorder %s22, 1
      %p103 = por %p101, %p102
      %p104 = scmp.ne.s32.totalorder %s95, %s96
      %p105 = scmp.eq.s32.totalorder %s22, 0
      %p106 = por %p104, %p105
      %p107 = scmp.ne.s32.totalorder %s95, %s96
      %p108 = scmp.eq.s32.totalorder %s23, 1
      %p109 = por %p107, %p108
      %p111 = scmp.ne.s32.totalorder %s96, %s110
      %p112 = scmp.eq.s32.totalorder %s23, 0
      %p113 = por %p111, %p112
      %s115 = sadd.s32 %s114, 1
      %p118 = scmp.eq.s32.totalorder %s17, 1
      %p119 = scmp.ne.s32.totalorder %s114, %s116
      %p120 = scmp.eq.s32.totalorder %s17, 0
      %p121 = por %p119, %p120
      %p122 = scmp.ne.s32.totalorder %s114, %s116
      %p123 = scmp.eq.s32.totalorder %s22, 1
      %p124 = por %p122, %p123
      %p125 = scmp.ne.s32.totalorder %s116, %s117
      %p126 = scmp.eq.s32.totalorder %s22, 0
      %p127 = por %p125, %p126
      %p128 = scmp.ne.s32.totalorder %s116, %s117
      %p129 = scmp.eq.s32.totalorder %s23, 1
      %p130 = por %p128, %p129
      %p132 = scmp.ne.s32.totalorder %s117, %s131
      %p133 = scmp.eq.s32.totalorder %s23, 0
      %p134 = por %p132, %p133
      %s135 = ssub.s32 %s17, %s24
      %p136 = scmp.eq.s32.totalorder %s135, 0
      %s138 = sadd.s32 %s137, 1
      %s139 = scalar_select %p136, %s137, %s138
      %p142 = pneg %p136
      %p143 = scmp.eq.s32.totalorder %s17, 1
      %p144 = por %p142, %p143
      %p145 = scmp.ne.s32.totalorder %s137, %s140
      %p146 = scmp.eq.s32.totalorder %s17, 0
      %p147 = por %p145, %p146
      %p148 = scmp.ne.s32.totalorder %s137, %s140
      %p149 = scmp.eq.s32.totalorder %s22, 1
      %p150 = por %p148, %p149
      %p151 = scmp.ne.s32.totalorder %s140, %s141
      %p152 = scmp.eq.s32.totalorder %s22, 0
      %p153 = por %p151, %p152
      %p154 = scmp.ne.s32.totalorder %s140, %s141
      %p155 = scmp.eq.s32.totalorder %s23, 1
      %p156 = por %p154, %p155
      %p158 = scmp.ne.s32.totalorder %s141, %s157
      %p159 = scmp.eq.s32.totalorder %s23, 0
      %p160 = por %p158, %p159
      %p161 = scmp.le.s32.totalorder 1, %s17
      %p162 = scmp.lt.s32.totalorder %s17, 3
      %p163 = pnand %p161, %p162
      %p164 = pneg %p163
      // Predicated region
      $region9: #{tpu_custom_call.1} parent=5 // pred_check
        _
      $region10: #{tpu_custom_call.1} parent=5 // pred_check_branch
        %166 = sbr.rel (%p163) target = $region12
      $region11: #{tpu_custom_call.1} parent=5 // pred_region
        %s167 = ssub.s32 %s17, 1
        // Predicated region
        $region13: #{tpu_custom_call.1} parent=11 // pred_check
          %p168 = pneg %p64
        $region14: #{tpu_custom_call.1} parent=11 // pred_check_branch
          %170 = sbr.rel (%p168) target = $region16
        $region15: #{tpu_custom_call.1} parent=11 // pred_region
          _
        $region16: #{tpu_custom_call.1} parent=11 // pred_fallthru
          _
        // Predicated region
        $region17: #{tpu_custom_call.1} parent=11 // pred_check
          %p171 = pneg %p85
        $region18: #{tpu_custom_call.1} parent=11 // pred_check_branch
          %173 = sbr.rel (%p171) target = $region20
        $region19: #{tpu_custom_call.1} parent=11 // pred_region
          _
        $region20: #{tpu_custom_call.1} parent=11 // pred_fallthru
          _
        // Predicated region
        $region21: #{tpu_custom_call.1} parent=11 // pred_check
          %p174 = pneg %p106
        $region22: #{tpu_custom_call.1} parent=11 // pred_check_branch
          %176 = sbr.rel (%p174) target = $region24
        $region23: #{tpu_custom_call.1} parent=11 // pred_region
          _
        $region24: #{tpu_custom_call.1} parent=11 // pred_fallthru
          _
        // Predicated region
        $region25: #{tpu_custom_call.1} parent=11 // pred_check
          %p177 = pneg %p127
        $region26: #{tpu_custom_call.1} parent=11 // pred_check_branch
          %179 = sbr.rel (%p177) target = $region28
        $region27: #{tpu_custom_call.1} parent=11 // pred_region
          _
        $region28: #{tpu_custom_call.1} parent=11 // pred_fallthru
          _
      $region12: #{tpu_custom_call.1} parent=5 // pred_fallthru
        _
      %p180 = scmp.lt.s32.totalorder %s17, 2
      // Predicated region
      $region29: #{tpu_custom_call.1} parent=5 // pred_check
        %p181 = pneg %p180
      $region30: #{tpu_custom_call.1} parent=5 // pred_check_branch
        %183 = sbr.rel (%p181) target = $region32
      $region31: #{tpu_custom_call.1} parent=5 // pred_region
        // Predicated region
        $region33: #{tpu_custom_call.1} parent=31 // pred_check
          %p184 = pneg %p37
        $region34: #{tpu_custom_call.1} parent=31 // pred_check_branch
          %186 = sbr.rel (%p184) target = $region36
        $region35: #{tpu_custom_call.1} parent=31 // pred_region
          %s187 = sand.u32 %s27, 1
          %s188 = scalar_lea.sflag [#allocation3], %s187
          %s189 = sand.u32 %s27, 1
          %s190 = smul.addr %s189, 8
          %s191 = scalar_lea.vmem [#allocation2], %s190
          %193 = vsyncadd %s188, 0
          %s194 = smul.addr %s17, 2
          %s195 = smul.addr %s194, 4
          %s196 = scalar_lea.hbm %s0, %s195
          %s198 = sshll.u32 %s196, 4
          %s199 = int_to_ptr.hbm [resolvable:$true] %s198
          %s200 = sshll.u32 %s191, 4
          %s201 = int_to_ptr.vmem [resolvable:$true] %s200
          %203 = dma.hbm_to_vmem [thread:$0]  %s199, 128, %s201, %s188
        $region36: #{tpu_custom_call.1} parent=31 // pred_fallthru
          _
      $region32: #{tpu_custom_call.1} parent=5 // pred_fallthru
        _
      %p204 = scmp.le.s32.totalorder 1, %s17
      %p205 = scmp.lt.s32.totalorder %s17, 3
      %p206 = pnand %p204, %p205
      %p207 = pneg %p206
      // Predicated region
      $region37: #{tpu_custom_call.1} parent=5 // pred_check
        _
      $region38: #{tpu_custom_call.1} parent=5 // pred_check_branch
        %209 = sbr.rel (%p206) target = $region40
      $region39: #{tpu_custom_call.1} parent=5 // pred_region
        %s210 = ssub.s32 %s17, 1
        %s211 = sand.u32 %s30, 1
        %s212 = scalar_lea.sflag [#allocation3], %s211
        %s213 = sand.u32 %s30, 1
        %s214 = smul.addr %s213, 8
        %s215 = scalar_lea.vmem [#allocation2], %s214
        // Predicated region
        $region41: #{tpu_custom_call.1} parent=39 // pred_check
          %p216 = pneg %p43
        $region42: #{tpu_custom_call.1} parent=39 // pred_check_branch
          %218 = sbr.rel (%p216) target = $region44
        $region43: #{tpu_custom_call.1} parent=39 // pred_region
          %220 = dma.done %s212, 128
        $region44: #{tpu_custom_call.1} parent=39 // pred_fallthru
          _
        %s221 = sand.u32 %s30, 1
        %s222 = scalar_lea.sflag [#allocation3], %s221
        %s223 = sand.u32 %s30, 1
        %s224 = smul.addr %s223, 8
        %s225 = scalar_lea.vmem [#allocation2], %s224
        %p226 = pneg %p43
        %p227 = pneg %p40
        %p228 = pneg %p64
        %p229 = pneg %p61
        %p230 = pneg %p85
        %p231 = pneg %p82
        %p232 = pneg %p106
        %p233 = pneg %p103
        %p234 = pneg %p127
        %p235 = pneg %p124
        %p236 = pneg %p153
        %p237 = pneg %p150
        %s238 = sand.u32 %s140, 1
        %s239 = scalar_lea.sflag [#allocation4], %s238
        %s240 = sand.u32 %s140, 1
        %s241 = smul.addr %s240, 8
        %s242 = scalar_lea.vmem [#allocation5], %s241
        %v243 = vld [vmem:[%s215] sm:$0xff]
        %245 = vst [vmem:[#allocation1] ss:$2 sm:$0xff] %v243
        %v246 = vld.sshfl [vmem:[#allocation1] sm:$0xff pattern:$0x75316420]
        %v247 = vld.sshfl [vmem:[#allocation1 + $0x8] sm:$0xff pattern:$0x75316420]
        %vm250 = vcmask 1043456
        %v251 = vsel %vm250, %v246, 0.0
        %v252 = vsel %vm250, %v247, 0.0
        %v253 = vadd.f32 %v251, %v252
        %254 = vadd.xlane.f32.xlu0 %v253
        %v255 = vpop.xlane.xlu0 %254
        %v256 = vmul.f32 %v255, 0.00390625
        %257 = vst [vmem:[#allocation1] ss:$2 sm:$0xff] %v243
        %v258 = vld.sshfl [vmem:[#allocation1] sm:$0xff pattern:$0x75316420]
        %v259 = vld.sshfl [vmem:[#allocation1 + $0x8] sm:$0xff pattern:$0x75316420]
        %v262 = vsel %vm250, %v258, -inf
        %v263 = vsel %vm250, %v259, -inf
        %v264 = vmax.f32 %v262, %v263
        %265 = vmax.xlane.f32.xlu0 %v264
        %v266 = vpop.xlane.xlu0 %265
        %v267 = vadd.f32 %v256, %v266
        %v268 = vld [vmem:[%s1] sm:$0xf]
        %v269 = vld [vmem:[%s2] sm:$0xf]
        %v270 = vmul.f32 %v269, 2.0
        %vm271 = vcmask 31744
        %v273 = vsel %vm271, %v268, 0
        %v276 = vsel %vm250, %v267, 0
        %278 = vmatpush.msra.mxu0 0.0
        %279 = vmatpush.msra.mxu0 0.0
        %280 = vmatpush.msra.mxu0 0.0
        %281 = vmatpush.msra.mxu0 0.0
        %282 = vmatpush.msra.mxu0 0.0
        %283 = vmatpush.msra.mxu0 0.0
        %284 = vmatpush.msra.mxu0 0.0
        %285 = vmatpush.msra.mxu0 0.0
        %286 = vmatpush.msra.mxu0 0.0
        %287 = vmatpush.msra.mxu0 0.0
        %288 = vmatpush.msra.mxu0 0.0
        %289 = vmatpush.msra.mxu0 0.0
        %290 = vmatpush.msra.mxu0 0.0
        %291 = vmatpush.msra.mxu0 0.0
        %292 = vmatpush.msra.mxu0 0.0
        %293 = vmatpush.msra.mxu0 %v276
        %294 = vmatmul.f32.gmra.mxu0 %v273
        %v295 = vpop.f32.mrf.mxu0
        %v296 = vadd.f32 %v270, %v295
        %297 = vdwg.mxu0
        %v298 = vxor.u32 %v296, 2147483648
        %v299 = vmul.f32 %v298, 1.442695
        %v300 = vpow.pop %v299
        %v301 = vadd.f32 %v300, 1.0
        %v302 = vrcp.pop %v301
        %v303 = vmul.f32 %v301, %v302
        %v304 = vsub.f32 1.0, %v303
        %v305 = vmul.f32 %v302, %v304
        %v306 = vadd.f32 %v302, %v305
        %vm307 = vweird.f32 %v301
        %vm308 = vweird.f32 %v302
        %vm309 = vmor %vm307, %vm308
        %v310 = vsel %vm309, %v302, %v306
        %v311 = vand.u32 2147483647, %v301
        %vm312 = vcmp.eq.f32.partialorder %v311, 8.507059e+37
        %v313 = vand.u32 %v301, 2147483648
        %v314 = vor.u32 1.1754944e-38, %v313
        %v315 = vsel %vm312, %v314, %v310
        %v316 = vmul.f32 1.0, %v315
        %v317 = vld [vmem:[%s3] sm:$0xf]
        %318 = vxpose.xlu0.b32.start [1/16] %v316, 128
        %319 = vxpose.xlu0.b32.cont [2/16] 0.0, 128
        %320 = vxpose.xlu0.b32.cont [3/16] 0.0, 128
        %321 = vxpose.xlu0.b32.cont [4/16] 0.0, 128
        %322 = vxpose.xlu0.b32.cont [5/16] 0.0, 128
        %323 = vxpose.xlu0.b32.cont [6/16] 0.0, 128
        %324 = vxpose.xlu0.b32.cont [7/16] 0.0, 128
        %325 = vxpose.xlu0.b32.cont [8/16] 0.0, 128
        %326 = vxpose.xlu0.b32.cont [9/16] 0.0, 128
        %327 = vxpose.xlu0.b32.cont [10/16] 0.0, 128
        %328 = vxpose.xlu0.b32.cont [11/16] 0.0, 128
        %329 = vxpose.xlu0.b32.cont [12/16] 0.0, 128
        %330 = vxpose.xlu0.b32.cont [13/16] 0.0, 128
        %331 = vxpose.xlu0.b32.cont [14/16] 0.0, 128
        %332 = vxpose.xlu0.b32.cont [15/16] 0.0, 128
        %333 = vxpose.xlu0.b32.end [16/16] 0.0, 128
        %v334 = vpop.trf.xlu0
        %v335 = vpop.trf.xlu0
        %v336 = vpop.trf.xlu0
        %v337 = vpop.trf.xlu0
        %v338 = vpop.trf.xlu0
        %v339 = vpop.trf.xlu0
        %v340 = vpop.trf.xlu0
        %v341 = vpop.trf.xlu0
        %v342 = vpop.trf.xlu0
        %v343 = vpop.trf.xlu0
        %v344 = vpop.trf.xlu0
        %v345 = vpop.trf.xlu0
        %v346 = vpop.trf.xlu0
        %v347 = vpop.trf.xlu0
        %v348 = vpop.trf.xlu0
        %v349 = vpop.trf.xlu0
        %v350 = vperm.slane %v334, 0
        %v351 = vmul.f32 %v317, %v350
        %v352 = vld [vmem:[%s4] sm:$0xf]
        %354 = vset.pattern.permute.xlu0 0
        %355 = vperm.xlu0 %354, %v352
        %v356 = vpop.permute.xlu0 %355
        %358 = vst [vmem:[#allocation1] ss:$2 sm:$0xff] %v243
        %v359 = vld.sshfl [vmem:[#allocation1] sm:$0xff pattern:$0x75316420]
        %v360 = vld.sshfl [vmem:[#allocation1 + $0x8] sm:$0xff pattern:$0x75316420]
        %v362 = vsel %vm271, %v351, 0
        %v364 = vsel %vm250, %v359, 0
        %v366 = vsel %vm250, %v360, 0
        %368 = vmatpush.msra.mxu0 0.0
        %369 = vmatpush.msra.mxu0 0.0
        %370 = vmatpush.msra.mxu0 0.0
        %371 = vmatpush.msra.mxu0 0.0
        %372 = vmatpush.msra.mxu0 0.0
        %373 = vmatpush.msra.mxu0 0.0
        %374 = vmatpush.msra.mxu0 0.0
        %375 = vmatpush.msra.mxu0 0.0
        %376 = vmatpush.msra.mxu0 0.0
        %377 = vmatpush.msra.mxu0 0.0
        %378 = vmatpush.msra.mxu0 0.0
        %379 = vmatpush.msra.mxu0 0.0
        %380 = vmatpush.msra.mxu0 0.0
        %381 = vmatpush.msra.mxu0 0.0
        %382 = vmatpush.msra.mxu0 0.0
        %383 = vmatpush.msra.mxu0 %v364
        %384 = vmatmul.f32.gmra.mxu0 %v362
        %v385 = vpop.f32.mrf.mxu0
        %v386 = vadd.f32 %v356, %v385
        %387 = vdwg.mxu0
        %388 = vmatpush.msra.mxu0 0.0
        %389 = vmatpush.msra.mxu0 0.0
        %390 = vmatpush.msra.mxu0 0.0
        %391 = vmatpush.msra.mxu0 0.0
        %392 = vmatpush.msra.mxu0 0.0
        %393 = vmatpush.msra.mxu0 0.0
        %394 = vmatpush.msra.mxu0 0.0
        %395 = vmatpush.msra.mxu0 0.0
        %396 = vmatpush.msra.mxu0 0.0
        %397 = vmatpush.msra.mxu0 0.0
        %398 = vmatpush.msra.mxu0 0.0
        %399 = vmatpush.msra.mxu0 0.0
        %400 = vmatpush.msra.mxu0 0.0
        %401 = vmatpush.msra.mxu0 0.0
        %402 = vmatpush.msra.mxu0 0.0
        %403 = vmatpush.msra.mxu0 %v366
        %404 = vmatmul.f32.gmra.mxu0 %v362
        %v405 = vpop.f32.mrf.mxu0
        %v406 = vadd.f32 %v356, %v405
        %407 = vdwg.mxu0
        %v410 = vrot.slane %v406, 4
        %v411 = vsel %vm250, %v386, %v410
        %413 = vst [vmem:[%s242] sm:$0xff] %v411
        %s414 = sand.u32 %s140, 1
        %s415 = scalar_lea.sflag [#allocation4], %s414
        %s416 = sand.u32 %s140, 1
        %s417 = smul.addr %s416, 8
        %s418 = scalar_lea.vmem [#allocation5], %s417
        // Predicated region
        $region45: #{tpu_custom_call.1} parent=39 // pred_check
          %p419 = pneg %p150
        $region46: #{tpu_custom_call.1} parent=39 // pred_check_branch
          %421 = sbr.rel (%p419) target = $region48
        $region47: #{tpu_custom_call.1} parent=39 // pred_region
          %423 = vsyncadd %s415, 0
          %s424 = smul.addr %s22, 2
          %s425 = smul.addr %s424, 4
          %s426 = scalar_lea.hbm %s5, %s425
          %s428 = sshll.u32 %s418, 4
          %s429 = int_to_ptr.vmem [resolvable:$true] %s428
          %s430 = sshll.u32 %s426, 4
          %s431 = int_to_ptr.hbm [resolvable:$true] %s430
          %433 = dma.vmem_to_hbm [thread:$0]  %s429, 128, %s431, %s415
        $region48: #{tpu_custom_call.1} parent=39 // pred_fallthru
          _
      $region40: #{tpu_custom_call.1} parent=5 // pred_fallthru
        _
      %p434 = scmp.le.s32.totalorder 2, %s17
      // Predicated region
      $region49: #{tpu_custom_call.1} parent=5 // pred_check
        %p435 = pneg %p434
      $region50: #{tpu_custom_call.1} parent=5 // pred_check_branch
        %437 = sbr.rel (%p435) target = $region52
      $region51: #{tpu_custom_call.1} parent=5 // pred_region
        %s438 = ssub.s32 %s17, 2
        // Predicated region
        $region53: #{tpu_custom_call.1} parent=51 // pred_check
          %p439 = pneg %p156
        $region54: #{tpu_custom_call.1} parent=51 // pred_check_branch
          %441 = sbr.rel (%p439) target = $region56
        $region55: #{tpu_custom_call.1} parent=51 // pred_region
          %s442 = sand.u32 %s141, 1
          %s443 = scalar_lea.sflag [#allocation4], %s442
          %s444 = sand.u32 %s141, 1
          %s445 = smul.addr %s444, 8
          %s446 = scalar_lea.vmem [#allocation5], %s445
          %448 = dma.done %s443, 128
        $region56: #{tpu_custom_call.1} parent=51 // pred_fallthru
          _
      $region52: #{tpu_custom_call.1} parent=5 // pred_fallthru
        _
    $region6: #{tpu_custom_call.1} parent=1 // loop_footer
      %s21 = sadd.s32 1, %s17
    $region7: #{tpu_custom_call.1} parent=1 // loop_footer_branch
      %16 = sbr.rel target = $region3
    $region8: #{tpu_custom_call.1} parent=1 // loop_exit
      _
    %449 = vsyncpa [#allocation3], 1
    %s450 = scalar_lea.sflag [#allocation3], 1
    %451 = vsyncpa %s450, 1
    %452 = vsyncpa [#allocation4], 1
    %s453 = scalar_lea.sflag [#allocation4], 1
    %454 = vsyncpa %s453, 1

</llo_original>
